<compile_context>
chip_gen: v6e
topology: v6e:2x2x1
jax: 0.10.0
libtpu: 0.0.40
codegen_flags: <defaults>
</compile_context>

<pallas_src>
import jax
import jax.numpy as jnp
import numpy as np
from jax.experimental import pallas as pl
from jax.experimental.pallas import tpu as pltpu

LN_EPS = 1e-5  # torch.nn.LayerNorm default


# ---------------------------------------------------------------------------
# Kernel A: LayerNorm + fused left|right projection (row tile of L).
# Emits one bf16 (1, TL, 2H) tile: [:, :H] = left, [:, H:] = right.
# ---------------------------------------------------------------------------
def _proj_kernel(x_ref, wlr_ref, g_ref, b_ref, lr_ref):
    x = x_ref[0].astype(jnp.float32)                     # (TL, D)

    # LayerNorm over d_single (f32 statistics).
    mu = jnp.mean(x, axis=-1, keepdims=True)
    xc = x - mu
    var = jnp.mean(xc * xc, axis=-1, keepdims=True)
    x_ln = xc * jax.lax.rsqrt(var + LN_EPS)
    x_ln = x_ln * g_ref[...] + b_ref[...]                # (1, D) broadcasts

    # One fused bf16 MXU matmul for both projections: (TL, D) @ (D, 2H).
    lr = jnp.dot(x_ln.astype(jnp.bfloat16), wlr_ref[...],
                 preferred_element_type=jnp.float32)     # (TL, 2H) f32
    # Single full-width bf16 store (no mid-vreg split into left/right).
    lr_ref[0] = lr.astype(jnp.bfloat16)


# ---------------------------------------------------------------------------
# Kernel B: factored outer product + output projection.
#   grid = (B, I_tiles, J_tiles).
#   CORRECTNESS INVARIANT: the n_ref caching below is only valid because grid
#   axis 2 (j) is the INNERMOST axis and is marked "arbitrary" (sequential on
#   one core); if j were reordered or marked parallel, n_ref would be stale.
# ---------------------------------------------------------------------------
def _outer_kernel(lr_i_ref, lr_j_ref, w2_ref, bias_ref, out_ref, n_ref):
    H = w2_ref.shape[0]
    TI = lr_i_ref.shape[1]
    P = out_ref.shape[-1]

    # N[i, e, p] = sum_d left[i, d] * W_out[d*H + e, p]; depends only on (b, i),
    # so compute once per i-tile (j == 0) and reuse across all j-tiles.
    @pl.when(pl.program_id(2) == 0)
    def _():
        left = lr_i_ref[0, :, :H]                                  # (TI, H) bf16
        n = jnp.dot(left, w2_ref[...],
                    preferred_element_type=jnp.float32)            # (TI, H*P) f32
        # (TI, H*P) -> (TI, H, P) is one VMEM relayout per i-tile, amortized
        # over all j-steps; it keeps every per-i matmul below a plain 2-D read.
        n_ref[...] = n.astype(jnp.bfloat16).reshape(TI, H, P)

    right = lr_j_ref[0, :, H:]                                     # (TJ, H) bf16
    bias = bias_ref[...]                                           # (1, P) f32

    # pair[i, j, p] = sum_e right[j, e] * N[i, e, p]
    # Explicit per-i 2-D MXU matmuls: no (TI,TJ,H) broadcast of `right`, no
    # (j,i,p)->(i,j,p) relayout; each (TJ,P) slab lands directly in its rows.
    @pl.loop(0, TI)
    def _(i):
        acc = jnp.dot(right, n_ref[i], preferred_element_type=jnp.float32)
        out_ref[0, i] = (acc + bias).astype(out_ref.dtype)         # bf16 store


# ---------------------------------------------------------------------------
# Wrapper helpers
# ---------------------------------------------------------------------------
def _pick_tile(n, target):
    """Largest divisor of n that is <= target and a multiple of 8 (or n itself)."""
    if n <= target:
        return n
    for t in range(target, 7, -1):
        if n % t == 0 and t % 8 == 0:
            return t
    # TODO(synk): pad L to a multiple of 8/128 instead of falling back to a
    # full-L tile for awkward sequence lengths.
    return n


def _chip_defaults():
    """(tile_j, vmem_limit_bytes) sized to the current chip's VMEM capacity."""
    try:
        vmem = pltpu.get_tpu_info().vmem_capacity_bytes
    except Exception:
        vmem = 64 * 1024 * 1024               # conservative: assume v7x (64 MiB/TC)
    if vmem >= 128 * 1024 * 1024:             # v5e / v6e: headroom for wider j tiles
        return 256, 96 * 1024 * 1024
    return 128, 56 * 1024 * 1024              # v7x-safe


def _kernel_b_vmem_bytes(TI, TJ, H, P):
    """Rough VMEM footprint of Kernel B: double-buffered blocks + scratch."""
    out_tile = TI * TJ * P * 2                # bf16 output tile
    lr_i = TI * 2 * H * 2                     # bf16
    lr_j = TJ * 2 * H * 2                     # bf16
    w2 = H * H * P * 2                        # bf16 (constant-index, still 2x buffered)
    bias = P * 4
    n_scratch = TI * H * P * 2                # bf16 scratch (single buffer)
    return 2 * (out_tile + lr_i + lr_j + w2 + bias) + n_scratch


# ---------------------------------------------------------------------------
# Wrapper
# ---------------------------------------------------------------------------
def outer_product(single, params, *, tile_l=256, tile_i=128, tile_j=None,
                  vmem_limit_bytes=None):
    B, L, D = single.shape
    H = params["w_left"].shape[1]
    P = params["w_out"].shape[1]

    tj_default, vmem_default = _chip_defaults()
    if tile_j is None:
        tile_j = tj_default
    if vmem_limit_bytes is None:
        vmem_limit_bytes = vmem_default

    TL = _pick_tile(L, tile_l)
    TI = _pick_tile(L, tile_i)
    TJ = _pick_tile(L, tile_j)

    # Guard: the divisor fallback (TI/TJ -> L) must not blow past the VMEM limit.
    need = _kernel_b_vmem_bytes(TI, TJ, H, P)
    if need > vmem_limit_bytes:
        raise ValueError(
            f"Kernel B tiles (TI={TI}, TJ={TJ}, P={P}) need ~{need >> 20} MiB VMEM, "
            f"over the {vmem_limit_bytes >> 20} MiB limit; pick smaller tiles or pad L.")

    # Fused projection weight (D, 2H) and reshaped output weight (H, H*P),
    # pre-cast to bf16 for the MXU.
    w_lr = jnp.concatenate([params["w_left"], params["w_right"]], axis=1)
    w_lr = w_lr.astype(jnp.bfloat16)
    w2 = params["w_out"].reshape(H, H * P).astype(jnp.bfloat16)

    # --- Kernel A: LayerNorm + fused left|right projection -> bf16 (B, L, 2H) ---
    lr = pl.pallas_call(
        _proj_kernel,
        out_shape=jax.ShapeDtypeStruct((B, L, 2 * H), jnp.bfloat16),
        grid=(B, L // TL),
        in_specs=[
            pl.BlockSpec((1, TL, D), lambda b, t: (b, t, 0)),
            pl.BlockSpec((D, 2 * H), lambda b, t: (0, 0)),
            pl.BlockSpec((1, D), lambda b, t: (0, 0)),
            pl.BlockSpec((1, D), lambda b, t: (0, 0)),
        ],
        out_specs=pl.BlockSpec((1, TL, 2 * H), lambda b, t: (b, t, 0)),
        compiler_params=pltpu.CompilerParams(
            dimension_semantics=("parallel", "parallel"),
            vmem_limit_bytes=vmem_limit_bytes,
        ),
    )(single, w_lr, params["ln_g"], params["ln_b"])

    # --- Kernel B: outer product + to_out projection -> bf16 (B, L, L, P) ------
    # j must stay innermost + "arbitrary" (see invariant in _outer_kernel).
    # b/i are "parallel" so v7x's two TensorCores split B * (L // TI) i-tiles.
    # NOTE: w2 / bias are small here (<=256 KiB); for large H*P, DMA them once
    # into a VMEM scratch (or single-buffer them) instead of default 2x buffering.
    pair = pl.pallas_call(
        _outer_kernel,
        out_shape=jax.ShapeDtypeStruct((B, L, L, P), jnp.bfloat16),
        grid=(B, L // TI, L // TJ),
        in_specs=[
            pl.BlockSpec((1, TI, 2 * H), lambda b, i, j: (b, i, 0)),
            pl.BlockSpec((1, TJ, 2 * H), lambda b, i, j: (b, j, 0)),
            pl.BlockSpec((H, H * P), lambda b, i, j: (0, 0)),
            pl.BlockSpec((1, P), lambda b, i, j: (0, 0)),
        ],
        out_specs=pl.BlockSpec((1, TI, TJ, P), lambda b, i, j: (b, i, j, 0)),
        scratch_shapes=[pltpu.VMEM((TI, H, P), jnp.bfloat16)],
        compiler_params=pltpu.CompilerParams(
            dimension_semantics=("parallel", "parallel", "arbitrary"),
            vmem_limit_bytes=vmem_limit_bytes,
        ),
    )(lr, lr, w2, params["b_out"])

    return pair


# ---------------------------------------------------------------------------
# Parameters (weights stored (in_dim, out_dim), i.e. the transpose of
# torch.nn.Linear.weight). NOTE: the module's "final" init for to_out is exact
# zeros (trivially zero forward), so small random values are used instead so
# the kernels do real work.
# ---------------------------------------------------------------------------
def init_params(key, d_single, d_hidden, d_pair):
    ks = jax.random.split(key, 6)
    lecun = 1.0 / np.sqrt(d_single)
    return {
        "ln_g": 1.0 + 0.1 * jax.random.normal(ks[0], (1, d_single), jnp.float32),
        "ln_b": 0.1 * jax.random.normal(ks[1], (1, d_single), jnp.float32),
        "w_left": jax.random.normal(ks[2], (d_single, d_hidden), jnp.float32) * lecun,
        "w_right": jax.random.normal(ks[3], (d_single, d_hidden), jnp.float32) * lecun,
        "w_out": jax.random.normal(ks[4], (d_hidden * d_hidden, d_pair), jnp.float32) * 0.1,
        "b_out": jax.random.normal(ks[5], (1, d_pair), jnp.float32) * 0.1,
    }


# ---------------------------------------------------------------------------
# Pure-JAX reference (mirrors the PyTorch forward exactly, f32 throughout)
# ---------------------------------------------------------------------------
def reference(single, params):
    B, L, D = single.shape
    mu = jnp.mean(single, axis=-1, keepdims=True)
    var = jnp.mean((single - mu) ** 2, axis=-1, keepdims=True)
    x = (single - mu) / jnp.sqrt(var + LN_EPS)
    x = x * params["ln_g"][0] + params["ln_b"][0]
    left = x @ params["w_left"]                              # (B, L, H)
    right = x @ params["w_right"]                            # (B, L, H)
    out = jnp.einsum("bid,bje->bijde", left, right)          # (B, L, L, H, H)
    out = out.reshape(B, L, L, -1)
    pair = out @ params["w_out"] + params["b_out"]           # (B, L, L, P)
    return pair


if __name__ == "__main__":
    key = jax.random.PRNGKey(0)
    # Small test shapes; d_pair a multiple of 128 so output stores are lane-dense.
    B, L, d_single, d_hidden, d_pair = 2, 16, 32, 32, 128

    k1, k2 = jax.random.split(key)
    single = jax.random.normal(k1, (B, L, d_single), jnp.float32)
    params = init_params(k2, d_single, d_hidden, d_pair)

    out = outer_product(single, params)
    out = jax.block_until_ready(out)

    ref = reference(single, params)
    # bf16 MXU operands AND bf16 output vs a pure-f32 reference.
    out_f32 = np.asarray(out, dtype=np.float32)
    atol = 3e-2 * float(jnp.max(jnp.abs(ref)))
    np.testing.assert_allclose(out_f32, np.asarray(ref), rtol=3e-2, atol=atol)

    print("KERNEL_OK")
</pallas_src>

<mosaic_0001>
module attributes {stable_mosaic.version = 11 : i64} {
  func.func @_proj_kernel(%arg0: i32, %arg1: i32, %arg2: memref<1x16x32xf32, #tpu.memory_space<vmem>>, %arg3: memref<32x64xbf16, #tpu.memory_space<vmem>>, %arg4: memref<1x32xf32, #tpu.memory_space<vmem>>, %arg5: memref<1x32xf32, #tpu.memory_space<vmem>>, %arg6: memref<1x16x64xbf16, #tpu.memory_space<vmem>>) attributes {dimension_semantics = [#tpu.dimension_semantics<parallel>, #tpu.dimension_semantics<parallel>], iteration_bounds = array<i64: 2, 1>, scalar_prefetch = 0 : i64, scratch_operands = 0 : i64, tpu.core_type = #tpu.core_type<tc>, window_params = [{transform_indices = @transform_0, window_bounds = array<i64: 1, 16, 32>}, {pipeline_mode = #tpu.pipeline_mode<synchronous>, transform_indices = @transform_1, window_bounds = array<i64: 32, 64>}, {pipeline_mode = #tpu.pipeline_mode<synchronous>, transform_indices = @transform_2, window_bounds = array<i64: 1, 32>}, {pipeline_mode = #tpu.pipeline_mode<synchronous>, transform_indices = @transform_3, window_bounds = array<i64: 1, 32>}, {transform_indices = @transform_4, window_bounds = array<i64: 1, 16, 64>}]} {
    %c0 = arith.constant 0 : index
    %c0_0 = arith.constant 0 : index
    %c0_1 = arith.constant 0 : index
    %0 = vector.load %arg2[%c0, %c0_0, %c0_1] : memref<1x16x32xf32, #tpu.memory_space<vmem>>, vector<1x16x32xf32>
    %1 = vector.shape_cast %0 : vector<1x16x32xf32> to vector<16x32xf32>
    %cst = arith.constant dense<0.000000e+00> : vector<16xf32>
    %2 = vector.multi_reduction <add>, %1, %cst [1] : vector<16x32xf32> to vector<16xf32>
    %3 = vector.shape_cast %2 : vector<16xf32> to vector<16x1xf32>
    %cst_2 = arith.constant 3.200000e+01 : f32
    %4 = vector.broadcast %cst_2 : f32 to vector<16x1xf32>
    %5 = arith.divf %3, %4 : vector<16x1xf32>
    %6 = vector.broadcast %5 : vector<16x1xf32> to vector<16x32xf32>
    %7 = arith.subf %1, %6 : vector<16x32xf32>
    %8 = arith.mulf %7, %7 : vector<16x32xf32>
    %cst_3 = arith.constant dense<0.000000e+00> : vector<16xf32>
    %9 = vector.multi_reduction <add>, %8, %cst_3 [1] : vector<16x32xf32> to vector<16xf32>
    %10 = vector.shape_cast %9 : vector<16xf32> to vector<16x1xf32>
    %cst_4 = arith.constant 3.200000e+01 : f32
    %11 = vector.broadcast %cst_4 : f32 to vector<16x1xf32>
    %12 = arith.divf %10, %11 : vector<16x1xf32>
    %cst_5 = arith.constant 9.99999974E-6 : f32
    %13 = vector.broadcast %cst_5 : f32 to vector<16x1xf32>
    %14 = arith.addf %12, %13 : vector<16x1xf32>
    %15 = math.rsqrt %14 : vector<16x1xf32>
    %16 = vector.broadcast %15 : vector<16x1xf32> to vector<16x32xf32>
    %17 = arith.mulf %7, %16 : vector<16x32xf32>
    %c0_6 = arith.constant 0 : index
    %c0_7 = arith.constant 0 : index
    %18 = vector.load %arg4[%c0_6, %c0_7] : memref<1x32xf32, #tpu.memory_space<vmem>>, vector<1x32xf32>
    %19 = vector.broadcast %18 : vector<1x32xf32> to vector<16x32xf32>
    %20 = arith.mulf %17, %19 : vector<16x32xf32>
    %c0_8 = arith.constant 0 : index
    %c0_9 = arith.constant 0 : index
    %21 = vector.load %arg5[%c0_8, %c0_9] : memref<1x32xf32, #tpu.memory_space<vmem>>, vector<1x32xf32>
    %22 = vector.broadcast %21 : vector<1x32xf32> to vector<16x32xf32>
    %23 = arith.addf %20, %22 : vector<16x32xf32>
    %24 = arith.truncf %23 : vector<16x32xf32> to vector<16x32xbf16>
    %c0_10 = arith.constant 0 : index
    %c0_11 = arith.constant 0 : index
    %25 = vector.load %arg3[%c0_10, %c0_11] : memref<32x64xbf16, #tpu.memory_space<vmem>>, vector<32x64xbf16>
    %cst_12 = arith.constant dense<0.000000e+00> : vector<16x64xf32>
    %26 = tpu.matmul %24, %25, %cst_12 {dimension_numbers = #tpu.dot_dimension_numbers<[1], [0], [0], [1], [0, 0, 1, 1], [], []>} : vector<16x32xbf16>, vector<32x64xbf16>, vector<16x64xf32> -> vector<16x64xf32>
    %27 = arith.truncf %26 : vector<16x64xf32> to vector<16x64xbf16>
    %c0_13 = arith.constant 0 : index
    %c0_14 = arith.constant 0 : index
    %c0_15 = arith.constant 0 : index
    %28 = vector.load %arg6[%c0_13, %c0_14, %c0_15] : memref<1x16x64xbf16, #tpu.memory_space<vmem>>, vector<1x16x64xbf16>
    %29 = vector.shape_cast %28 : vector<1x16x64xbf16> to vector<16x64xbf16>
    %30 = vector.shape_cast %27 : vector<16x64xbf16> to vector<1x16x64xbf16>
    tpu.vector_store %arg6[%c0_13, %c0_14, %c0_15], %30 {strides = array<i32>} : memref<1x16x64xbf16, #tpu.memory_space<vmem>>, vector<1x16x64xbf16>,
    return
  }
  func.func @transform_0(%arg0: i32, %arg1: i32) -> (i32, i32, i32) {
    %c0_i32 = arith.constant 0 : i32
    %c0_i32_0 = arith.constant 0 : i32
    return %arg0, %arg1, %c0_i32 : i32, i32, i32
  }
  func.func @transform_1(%arg0: i32, %arg1: i32) -> (i32, i32) {
    %c0_i32 = arith.constant 0 : i32
    %c0_i32_0 = arith.constant 0 : i32
    %c0_i32_1 = arith.constant 0 : i32
    return %c0_i32, %c0_i32_0 : i32, i32
  }
  func.func @transform_2(%arg0: i32, %arg1: i32) -> (i32, i32) {
    %c0_i32 = arith.constant 0 : i32
    %c0_i32_0 = arith.constant 0 : i32
    %c0_i32_1 = arith.constant 0 : i32
    return %c0_i32, %c0_i32_0 : i32, i32
  }
  func.func @transform_3(%arg0: i32, %arg1: i32) -> (i32, i32) {
    %c0_i32 = arith.constant 0 : i32
    %c0_i32_0 = arith.constant 0 : i32
    %c0_i32_1 = arith.constant 0 : i32
    return %c0_i32, %c0_i32_0 : i32, i32
  }
  func.func @transform_4(%arg0: i32, %arg1: i32) -> (i32, i32, i32) {
    %c0_i32 = arith.constant 0 : i32
    %c0_i32_0 = arith.constant 0 : i32
    return %arg0, %arg1, %c0_i32 : i32, i32, i32
  }
}

</mosaic_0001>

<llo_original>
// kernel: tpu_custom_call.1
$region0: #{tpu_custom_call.1}
  #allocation0 [shape = 'u32[]', space=smem, size = 0x4, offset = 0x4, fixed_abs, tag = 'smem constant byte address 0x4 - core index']
  #allocation1 [shape = 'u32[144,128]{1,0:T(1,128)}', space=vmem, size = 0x12000, scoped, tag = 'internal scratch']
  %s0 = inlined_call_operand.hbm [shape: f32[2,16,32], index: 0, kind: input, shape index: {}]
  %s1 = inlined_call_operand.hbm [shape: bf16[32,64], index: 1, kind: input, shape index: {}]
  %s2 = inlined_call_operand.vmem [shape: f32[1,32], index: 2, kind: input, shape index: {}]
  %s3 = inlined_call_operand.vmem [shape: f32[1,32], index: 3, kind: input, shape index: {}]
  %s4 = inlined_call_operand.hbm [shape: bf16[2,16,64], index: 4, kind: output, shape index: {}]
  %s5 = sld [smem:[#allocation0]]
  $region57: #{tpu_custom_call.1} parent=0
    _
  %s7 = ssub.s32 1, %s5
  %s8 = scalar_select 0, %s7, %s5
  $region1: #{tpu_custom_call.1} parent=0
    #allocation2 [shape = 'u8[16384]{0}', space=vmem, size = 0x4000, scoped, tag = 'input window, operand 0']
    #allocation3 [shape = 's32[2]{0}', space=sflag, size = 0x8, scoped, tag = 'scoped memory for tpu_custom_call.1']
    #allocation4 [shape = 's32[2]{0}', space=sflag, size = 0x8, scoped, tag = 'scoped memory for tpu_custom_call.1']
    #allocation5 [shape = 'u8[8192]{0}', space=vmem, size = 0x2000, scoped, tag = 'input window, operand 1, single buffered']
    #allocation6 [shape = 's32[1]{0}', space=sflag, size = 0x4, scoped, tag = 'scoped memory for tpu_custom_call.1']
    #allocation7 [shape = 'u8[8192]{0}', space=vmem, size = 0x2000, scoped, tag = 'output window, operand 0']
    %9 = vsyncpa [#allocation3], 0
    %s10 = scalar_lea.sflag [#allocation3], 1
    %11 = vsyncpa %s10, 0
    %12 = vsyncpa [#allocation6], 0
    %13 = vsyncpa [#allocation4], 0
    %s14 = scalar_lea.sflag [#allocation4], 1
    %15 = vsyncpa %s14, 0
    loop: start=0, step=1, limit=4
    $region2: #{tpu_custom_call.1} parent=1 // loop_pre_header
      _
    $region3: #{tpu_custom_call.1} parent=1 // loop_header
      %s17 = sphi 0, %s21
      %p18 = scmp.ge.s32.totalorder %s17, 4
      %s24 = sphi 0, %s36
      %s25 = sphi 0, %s32
      %s26 = sphi 0, %s24
      %s27 = sphi 0, %s25
      %s28 = sphi 0, %s26
      %s29 = sphi 0, %s27
      %s41 = sphi 0, %s43
      %s44 = sphi 0, %s41
      %s45 = sphi 0, %s44
      %s61 = sphi 0, %s45
      %s65 = sphi 0, %s65
      %s67 = sphi 0, %s65
      %s68 = sphi 0, %s67
      %s82 = sphi 0, %s68
      %s86 = sphi 0, %s86
      %s88 = sphi 0, %s86
      %s89 = sphi 0, %s88
      %s103 = sphi 0, %s89
      %s107 = sphi 0, %s107
      %s109 = sphi 0, %s107
      %s110 = sphi 0, %s109
      %s124 = sphi 0, %s110
      %s132 = sphi 0, %s134
      %s135 = sphi 0, %s132
      %s136 = sphi 0, %s135
      %s152 = sphi 0, %s136
    $region4: #{tpu_custom_call.1} parent=1 // loop_header_branch
      %20 = sbr.rel (%p18) target = $region8
    $region5: #{tpu_custom_call.1} parent=1 // loop_body
      %s22 = ssub.s32 %s17, 1
      %s23 = ssub.s32 %s17, 2
      %s30 = sadd.s32 1, %s25
      %p31 = scmp.ge.s32.totalorder %s30, 1
      %s32 = scalar_select %p31, 0, %s30
      %s33 = sadd.s32 1, %s24
      %s34 = scalar_select %p31, %s33, %s24
      %p35 = scmp.ge.s32.totalorder %s34, 2
      %s36 = scalar_select %p35, 0, %s34
      %s37 = ssub.s32 %s24, %s36
      %s38 = ssub.s32 %s25, %s32
      %s39 = sor.u32 %s37, %s38
      %p40 = scmp.eq.s32.totalorder %s39, 0
      %s42 = sadd.s32 %s41, 1
      %s43 = scalar_select %p40, %s41, %s42
      %p46 = pneg %p40
      %p47 = scmp.eq.s32.totalorder %s17, 1
      %p48 = por %p46, %p47
      %p49 = scmp.ne.s32.totalorder %s41, %s44
      %p50 = scmp.eq.s32.totalorder %s17, 0
      %p51 = por %p49, %p50
      %p52 = scmp.ne.s32.totalorder %s41, %s44
      %p53 = scmp.eq.s32.totalorder %s22, 1
      %p54 = por %p52, %p53
      %p55 = scmp.ne.s32.totalorder %s44, %s45
      %p56 = scmp.eq.s32.totalorder %s22, 0
      %p57 = por %p55, %p56
      %p58 = scmp.ne.s32.totalorder %s44, %s45
      %p59 = scmp.eq.s32.totalorder %s23, 1
      %p60 = por %p58, %p59
      %p62 = scmp.ne.s32.totalorder %s45, %s61
      %p63 = scmp.eq.s32.totalorder %s23, 0
      %p64 = por %p62, %p63
      %s66 = sadd.s32 %s65, 1
      %p69 = scmp.eq.s32.totalorder %s17, 1
      %p70 = scmp.ne.s32.totalorder %s65, %s67
      %p71 = scmp.eq.s32.totalorder %s17, 0
      %p72 = por %p70, %p71
      %p73 = scmp.ne.s32.totalorder %s65, %s67
      %p74 = scmp.eq.s32.totalorder %s22, 1
      %p75 = por %p73, %p74
      %p76 = scmp.ne.s32.totalorder %s67, %s68
      %p77 = scmp.eq.s32.totalorder %s22, 0
      %p78 = por %p76, %p77
      %p79 = scmp.ne.s32.totalorder %s67, %s68
      %p80 = scmp.eq.s32.totalorder %s23, 1
      %p81 = por %p79, %p80
      %p83 = scmp.ne.s32.totalorder %s68, %s82
      %p84 = scmp.eq.s32.totalorder %s23, 0
      %p85 = por %p83, %p84
      %s87 = sadd.s32 %s86, 1
      %p90 = scmp.eq.s32.totalorder %s17, 1
      %p91 = scmp.ne.s32.totalorder %s86, %s88
      %p92 = scmp.eq.s32.totalorder %s17, 0
      %p93 = por %p91, %p92
      %p94 = scmp.ne.s32.totalorder %s86, %s88
      %p95 = scmp.eq.s32.totalorder %s22, 1
      %p96 = por %p94, %p95
      %p97 = scmp.ne.s32.totalorder %s88, %s89
      %p98 = scmp.eq.s32.totalorder %s22, 0
      %p99 = por %p97, %p98
      %p100 = scmp.ne.s32.totalorder %s88, %s89
      %p101 = scmp.eq.s32.totalorder %s23, 1
      %p102 = por %p100, %p101
      %p104 = scmp.ne.s32.totalorder %s89, %s103
      %p105 = scmp.eq.s32.totalorder %s23, 0
      %p106 = por %p104, %p105
      %s108 = sadd.s32 %s107, 1
      %p111 = scmp.eq.s32.totalorder %s17, 1
      %p112 = scmp.ne.s32.totalorder %s107, %s109
      %p113 = scmp.eq.s32.totalorder %s17, 0
      %p114 = por %p112, %p113
      %p115 = scmp.ne.s32.totalorder %s107, %s109
      %p116 = scmp.eq.s32.totalorder %s22, 1
      %p117 = por %p115, %p116
      %p118 = scmp.ne.s32.totalorder %s109, %s110
      %p119 = scmp.eq.s32.totalorder %s22, 0
      %p120 = por %p118, %p119
      %p121 = scmp.ne.s32.totalorder %s109, %s110
      %p122 = scmp.eq.s32.totalorder %s23, 1
      %p123 = por %p121, %p122
      %p125 = scmp.ne.s32.totalorder %s110, %s124
      %p126 = scmp.eq.s32.totalorder %s23, 0
      %p127 = por %p125, %p126
      %s128 = ssub.s32 %s24, %s36
      %s129 = ssub.s32 %s25, %s32
      %s130 = sor.u32 %s128, %s129
      %p131 = scmp.eq.s32.totalorder %s130, 0
      %s133 = sadd.s32 %s132, 1
      %s134 = scalar_select %p131, %s132, %s133
      %p137 = pneg %p131
      %p138 = scmp.eq.s32.totalorder %s17, 1
      %p139 = por %p137, %p138
      %p140 = scmp.ne.s32.totalorder %s132, %s135
      %p141 = scmp.eq.s32.totalorder %s17, 0
      %p142 = por %p140, %p141
      %p143 = scmp.ne.s32.totalorder %s132, %s135
      %p144 = scmp.eq.s32.totalorder %s22, 1
      %p145 = por %p143, %p144
      %p146 = scmp.ne.s32.totalorder %s135, %s136
      %p147 = scmp.eq.s32.totalorder %s22, 0
      %p148 = por %p146, %p147
      %p149 = scmp.ne.s32.totalorder %s135, %s136
      %p150 = scmp.eq.s32.totalorder %s23, 1
      %p151 = por %p149, %p150
      %p153 = scmp.ne.s32.totalorder %s136, %s152
      %p154 = scmp.eq.s32.totalorder %s23, 0
      %p155 = por %p153, %p154
      %p156 = scmp.le.s32.totalorder 1, %s17
      %p157 = scmp.lt.s32.totalorder %s17, 3
      %p158 = pnand %p156, %p157
      %p159 = pneg %p158
      // Predicated region
      $region9: #{tpu_custom_call.1} parent=5 // pred_check
        _
      $region10: #{tpu_custom_call.1} parent=5 // pred_check_branch
        %161 = sbr.rel (%p158) target = $region12
      $region11: #{tpu_custom_call.1} parent=5 // pred_region
        %s162 = ssub.s32 %s17, 1
        // Predicated region
        $region13: #{tpu_custom_call.1} parent=11 // pred_check
          %p163 = pneg %p78
        $region14: #{tpu_custom_call.1} parent=11 // pred_check_branch
          %165 = sbr.rel (%p163) target = $region16
        $region15: #{tpu_custom_call.1} parent=11 // pred_region
          %s167 = ssub.s32 256, 256
          %168 = vsyncadd [#allocation6], %s167
          %s169 = sshll.u32 [#allocation5], 4
          %s170 = int_to_ptr.vmem [resolvable:$true] %s169
          %175 = dma.hbm_to_vmem [thread:$0]  %s1, 256, %s170, [#allocation6], 64, 64, 4
        $region16: #{tpu_custom_call.1} parent=11 // pred_fallthru
          _
        // Predicated region
        $region17: #{tpu_custom_call.1} parent=11 // pred_check
          %p176 = pneg %p99
        $region18: #{tpu_custom_call.1} parent=11 // pred_check_branch
          %178 = sbr.rel (%p176) target = $region20
        $region19: #{tpu_custom_call.1} parent=11 // pred_region
          _
        $region20: #{tpu_custom_call.1} parent=11 // pred_fallthru
          _
        // Predicated region
        $region21: #{tpu_custom_call.1} parent=11 // pred_check
          %p179 = pneg %p120
        $region22: #{tpu_custom_call.1} parent=11 // pred_check_branch
          %181 = sbr.rel (%p179) target = $region24
        $region23: #{tpu_custom_call.1} parent=11 // pred_region
          _
        $region24: #{tpu_custom_call.1} parent=11 // pred_fallthru
          _
      $region12: #{tpu_custom_call.1} parent=5 // pred_fallthru
        _
      %p182 = scmp.lt.s32.totalorder %s17, 2
      // Predicated region
      $region25: #{tpu_custom_call.1} parent=5 // pred_check
        %p183 = pneg %p182
      $region26: #{tpu_custom_call.1} parent=5 // pred_check_branch
        %185 = sbr.rel (%p183) target = $region28
      $region27: #{tpu_custom_call.1} parent=5 // pred_region
        // Predicated region
        $region29: #{tpu_custom_call.1} parent=27 // pred_check
          %p186 = pneg %p51
        $region30: #{tpu_custom_call.1} parent=27 // pred_check_branch
          %188 = sbr.rel (%p186) target = $region32
        $region31: #{tpu_custom_call.1} parent=27 // pred_region
          %s189 = sand.u32 %s41, 1
          %s190 = scalar_lea.sflag [#allocation3], %s189
          %s191 = sand.u32 %s41, 1
          %s192 = smul.addr %s191, 16
          %s193 = scalar_lea.vmem [#allocation2], %s192
          %s194 = smul.u32 2, %s25
          %s196 = ssub.s32 256, 256
          %197 = vsyncadd %s190, %s196
          %s198 = smul.addr %s24, 2
          %s199 = sadd.s32 %s194, %s198
          %s200 = smul.addr %s199, 128
          %s201 = scalar_lea.hbm %s0, %s200
          %s202 = sshll.u32 %s193, 4
          %s203 = int_to_ptr.vmem [resolvable:$true] %s202
          %208 = dma.hbm_to_vmem [thread:$0]  %s201, 256, %s203, %s190, 128, 128, 8
        $region32: #{tpu_custom_call.1} parent=27 // pred_fallthru
          _
      $region28: #{tpu_custom_call.1} parent=5 // pred_fallthru
        _
      %p209 = scmp.le.s32.totalorder 1, %s17
      %p210 = scmp.lt.s32.totalorder %s17, 3
      %p211 = pnand %p209, %p210
      %p212 = pneg %p211
      // Predicated region
      $region33: #{tpu_custom_call.1} parent=5 // pred_check
        _
      $region34: #{tpu_custom_call.1} parent=5 // pred_check_branch
        %214 = sbr.rel (%p211) target = $region36
      $region35: #{tpu_custom_call.1} parent=5 // pred_region
        %s215 = ssub.s32 %s17, 1
        %s216 = sand.u32 %s44, 1
        %s217 = scalar_lea.sflag [#allocation3], %s216
        %s218 = sand.u32 %s44, 1
        %s219 = smul.addr %s218, 16
        %s220 = scalar_lea.vmem [#allocation2], %s219
        // Predicated region
        $region37: #{tpu_custom_call.1} parent=35 // pred_check
          %p221 = pneg %p57
        $region38: #{tpu_custom_call.1} parent=35 // pred_check_branch
          %223 = sbr.rel (%p221) target = $region40
        $region39: #{tpu_custom_call.1} parent=35 // pred_region
          %224 = dma.done %s217, 256
        $region40: #{tpu_custom_call.1} parent=35 // pred_fallthru
          _
        // Predicated region
        $region41: #{tpu_custom_call.1} parent=35 // pred_check
          %p225 = pneg %p78
        $region42: #{tpu_custom_call.1} parent=35 // pred_check_branch
          %227 = sbr.rel (%p225) target = $region44
        $region43: #{tpu_custom_call.1} parent=35 // pred_region
          %228 = dma.done [#allocation6], 256
        $region44: #{tpu_custom_call.1} parent=35 // pred_fallthru
          _
        %s229 = sand.u32 %s44, 1
        %s230 = scalar_lea.sflag [#allocation3], %s229
        %s231 = sand.u32 %s44, 1
        %s232 = smul.addr %s231, 16
        %s233 = scalar_lea.vmem [#allocation2], %s232
        %p234 = pneg %p57
        %p235 = pneg %p54
        %p236 = pneg %p78
        %p237 = pneg %p75
        %p238 = pneg %p99
        %p239 = pneg %p96
        %p240 = pneg %p120
        %p241 = pneg %p117
        %p242 = pneg %p148
        %p243 = pneg %p145
        %s244 = sand.u32 %s135, 1
        %s245 = scalar_lea.sflag [#allocation4], %s244
        %s246 = sand.u32 %s135, 1
        %s247 = smul.addr %s246, 8
        %s248 = scalar_lea.vmem [#allocation7], %s247
        %s249 = smul.u32 2, %s27
        %s250 = smul.u32 2, %s27
        %v252 = vld [vmem:[%s220] sm:$0xff]
        %v253 = vld [vmem:[%s220 + $0x8] sm:$0xff]
        %vm254 = vcmask 261120
        %v255 = vsel %vm254, %v252, 0.0
        %256 = vadd.xlane.f32.xlu0 %v255
        %v257 = vpop.xlane.xlu0 %256
        %v258 = vsel %vm254, %v253, 0.0
        %259 = vadd.xlane.f32.xlu0 %v258
        %v260 = vpop.xlane.xlu0 %259
        %v261 = vrcp.pop 32.0
        %v262 = vmul.f32 %v257, %v261
        %v263 = vmul.f32 %v260, %v261
        %v264 = vsub.f32 %v252, %v262
        %v265 = vsub.f32 %v253, %v263
        %v266 = vmul.f32 %v264, %v264
        %v267 = vmul.f32 %v265, %v265
        %v268 = vsel %vm254, %v266, 0.0
        %269 = vadd.xlane.f32.xlu0 %v268
        %v270 = vpop.xlane.xlu0 %269
        %v271 = vsel %vm254, %v267, 0.0
        %272 = vadd.xlane.f32.xlu0 %v271
        %v273 = vpop.xlane.xlu0 %272
        %v274 = vmul.f32 %v270, %v261
        %v275 = vmul.f32 %v273, %v261
        %v276 = vadd.f32 %v274, 1e-05
        %v277 = vadd.f32 %v275, 1e-05
        %v278 = vrsqrt.pop %v276
        %v279 = vrsqrt.pop %v277
        %v280 = vmul.f32 %v264, %v278
        %v281 = vmul.f32 %v265, %v279
        %v282 = vld [vmem:[%s2] sm:$0x1]
        %v284 = vlaneseq
        %v285 = vshrl.u32 %v284, 7
        %v286 = vsub.s32 0, %v285
        %v287 = vrot.slane %v282, %v286
        %v289 = vmul.f32 %v280, %v287
        %v290 = vmul.f32 %v281, %v287
        %v291 = vld [vmem:[%s3] sm:$0x1]
        %v293 = vlaneseq
        %v294 = vshrl.u32 %v293, 7
        %v295 = vsub.s32 0, %v294
        %v296 = vrot.slane %v291, %v295
        %v298 = vadd.f32 %v289, %v296
        %v299 = vadd.f32 %v290, %v296
        %v300 = vpack.c.bf16 %v299, %v298
        %v301 = vld [vmem:[#allocation5] sm:$0xf]
        %v302 = vld [vmem:[#allocation5 + $0x4] sm:$0xf]
        %v303 = vld [vmem:[#allocation5 + $0x8] sm:$0xf]
        %v304 = vld [vmem:[#allocation5 + $0xc] sm:$0xf]
        %v309 = vunpack.c.l.b16 %v301
        %v310 = vunpack.c.l.b16 %v302
        %v311 = vunpack.c.l.b16 %v303
        %v312 = vunpack.c.l.b16 %v304
        %v313 = vpack.c.b16 %v310, %v309
        %v314 = vpack.c.b16 %v312, %v311
        %v318 = vsel %vm254, %v300, 0
        %320 = vmatprep.subr.bf16.mxu0 0
        %321 = vmatpush1.bf16.msra.mxu0 0
        %322 = vmatprep.subr.bf16.mxu0 0
        %323 = vmatpush1.bf16.msra.mxu0 0
        %324 = vmatprep.subr.bf16.mxu0 0
        %325 = vmatpush1.bf16.msra.mxu0 0
        %326 = vmatprep.subr.bf16.mxu0 0
        %327 = vmatpush1.bf16.msra.mxu0 0
        %328 = vmatprep.subr.bf16.mxu0 0
        %329 = vmatpush1.bf16.msra.mxu0 0
        %330 = vmatprep.subr.bf16.mxu0 0
        %331 = vmatpush1.bf16.msra.mxu0 0
        %332 = vmatprep.subr.bf16.mxu0 0
        %333 = vmatpush1.bf16.msra.mxu0 %v314
        %334 = vmatprep.subr.bf16.mxu0 0
        %335 = vmatpush1.bf16.msra.mxu0 %v313
        %336 = vmatprep.subr.bf16.mxu0 0
        %337 = vmatpush2.bf16.msra.mxu0 0
        %338 = vmatprep.subr.bf16.mxu0 0
        %339 = vmatpush2.bf16.msra.mxu0 0
        %340 = vmatprep.subr.bf16.mxu0 0
        %341 = vmatpush2.bf16.msra.mxu0 0
        %342 = vmatprep.subr.bf16.mxu0 0
        %343 = vmatpush2.bf16.msra.mxu0 0
        %344 = vmatprep.subr.bf16.mxu0 0
        %345 = vmatpush2.bf16.msra.mxu0 0
        %346 = vmatprep.subr.bf16.mxu0 0
        %347 = vmatpush2.bf16.msra.mxu0 0
        %348 = vmatprep.subr.bf16.mxu0 0
        %349 = vmatpush2.bf16.msra.mxu0 0
        %350 = vmatprep.subr.bf16.mxu0 0
        %351 = vmatpush2.bf16.msra.mxu0 0
        %352 = vmatprep.mubr.bf16.mxu0 0
        %353 = vmatmul.mubr.bf16.gmra.mxu0 %v318
        %v354 = vpop.f32.mrf.mxu0
        %v355 = vadd.f32 0.0, %v354
        %v356 = vpop.f32.mrf.mxu0
        %v357 = vpop.f32.mrf.mxu0
        %v358 = vadd.f32 0.0, %v357
        %v359 = vpop.f32.mrf.mxu0
        %360 = vdwg.mxu0
        %v361 = vpack.c.bf16 %v358, %v355
        %v363 = vunpack.c.l.b16 %v361
        %v364 = vunpack.c.h.b16 %v361
        %v365 = vpack.c.b16 %v363, %v363
        %v366 = vpack.c.b16 %v364, %v364
        %vm369 = vcmask 519168
        %370 = vst.msk [vmem:[%s248] sm:$0xf] %vm369, %v365
        %371 = vst.msk [vmem:[%s248 + $0x4] sm:$0xf] %vm369, %v366
        %s372 = sand.u32 %s135, 1
        %s373 = scalar_lea.sflag [#allocation4], %s372
        %s374 = sand.u32 %s135, 1
        %s375 = smul.addr %s374, 8
        %s376 = scalar_lea.vmem [#allocation7], %s375
        // Predicated region
        $region45: #{tpu_custom_call.1} parent=35 // pred_check
          %p377 = pneg %p145
        $region46: #{tpu_custom_call.1} parent=35 // pred_check_branch
          %379 = sbr.rel (%p377) target = $region48
        $region47: #{tpu_custom_call.1} parent=35 // pred_region
          %s380 = smul.u32 2, %s27
          %s382 = ssub.s32 128, 128
          %383 = vsyncadd %s373, %s382
          %s384 = smul.addr %s26, 2
          %s385 = sadd.s32 %s380, %s384
          %s386 = smul.addr %s385, 64
          %s387 = scalar_lea.hbm %s4, %s386
          %s388 = sshll.u32 %s376, 4
          %s389 = int_to_ptr.vmem [resolvable:$true] %s388
          %394 = dma.vmem_to_hbm [thread:$0]  %s389, 128, %s387, %s373, 64, 64, 4
        $region48: #{tpu_custom_call.1} parent=35 // pred_fallthru
          _
      $region36: #{tpu_custom_call.1} parent=5 // pred_fallthru
        _
      %p395 = scmp.le.s32.totalorder 2, %s17
      // Predicated region
      $region49: #{tpu_custom_call.1} parent=5 // pred_check
        %p396 = pneg %p395
      $region50: #{tpu_custom_call.1} parent=5 // pred_check_branch
        %398 = sbr.rel (%p396) target = $region52
      $region51: #{tpu_custom_call.1} parent=5 // pred_region
        %s399 = ssub.s32 %s17, 2
        // Predicated region
        $region53: #{tpu_custom_call.1} parent=51 // pred_check
          %p400 = pneg %p151
        $region54: #{tpu_custom_call.1} parent=51 // pred_check_branch
          %402 = sbr.rel (%p400) target = $region56
        $region55: #{tpu_custom_call.1} parent=51 // pred_region
          %s403 = sand.u32 %s136, 1
          %s404 = scalar_lea.sflag [#allocation4], %s403
          %s405 = sand.u32 %s136, 1
          %s406 = smul.addr %s405, 8
          %s407 = scalar_lea.vmem [#allocation7], %s406
          %408 = dma.done %s404, 128
        $region56: #{tpu_custom_call.1} parent=51 // pred_fallthru
          _
      $region52: #{tpu_custom_call.1} parent=5 // pred_fallthru
        _
    $region6: #{tpu_custom_call.1} parent=1 // loop_footer
      %s21 = sadd.s32 1, %s17
    $region7: #{tpu_custom_call.1} parent=1 // loop_footer_branch
      %16 = sbr.rel target = $region3
    $region8: #{tpu_custom_call.1} parent=1 // loop_exit
      _
    %409 = vsyncpa [#allocation3], 1
    %s410 = scalar_lea.sflag [#allocation3], 1
    %411 = vsyncpa %s410, 1
    %412 = vsyncpa [#allocation6], 1
    %413 = vsyncpa [#allocation4], 1
    %s414 = scalar_lea.sflag [#allocation4], 1
    %415 = vsyncpa %s414, 1

</llo_original>
